<compile_context>
chip_gen: v7x
topology: tpu7x:2x2x1
jax: 0.10.0
libtpu: 0.0.40
codegen_flags: <defaults>
</compile_context>

<pallas_src>
import jax
import jax.numpy as jnp
from jax import lax
from jax.experimental import pallas as pl
from jax.experimental.pallas import tpu as pltpu


def _pick_tile(dim, preferred=256):
    """Use an MXU-friendly tile when it divides the dim, else the full extent (demo sizes)."""
    return preferred if dim % preferred == 0 else dim


# --------------------------------------------------------------------------- #
# Kernel 1: fused, full-width QKV projection  (rows, C) @ (C, 3C)              #
# --------------------------------------------------------------------------- #
def _qkv_proj_kernel(x_ref, w_ref, o_ref):
    o_ref[...] = jnp.dot(
        x_ref[...], w_ref[...], preferred_element_type=jnp.float32
    ).astype(o_ref.dtype)


# --------------------------------------------------------------------------- #
# Kernel 2: flash attention over all heads + fused output projection           #
# --------------------------------------------------------------------------- #
def _flash_mha_kernel(q_ref, k_ref, v_ref, wp_ref, bp_ref, o_ref,
                      m_scr, l_scr, acc_scr, cat_scr):
    # q_ref: (H, Tq, hs), k_ref/v_ref: (H, Tkv, hs), wp_ref: (C, C), bp_ref: (1, C)
    num_heads, t_q, hs = q_ref.shape
    t_kv = k_ref.shape[1]
    qi = pl.program_id(1)
    ki = pl.program_id(2)
    n_kv = pl.num_programs(2)

    @pl.when(ki == 0)
    def _init():
        m_scr[...] = jnp.full(m_scr.shape, -jnp.inf, dtype=m_scr.dtype)
        l_scr[...] = jnp.zeros(l_scr.shape, dtype=l_scr.dtype)
        acc_scr[...] = jnp.zeros(acc_scr.shape, dtype=acc_scr.dtype)

    # Skip kv tiles that are entirely in the (causally masked) future of this q tile.
    @pl.when(ki * t_kv <= qi * t_q + (t_q - 1))
    def _compute():
        # Batched-over-heads scores: (H, Tq, hs) x (H, Tkv, hs) -> (H, Tq, Tkv), f32 acc.
        s = jnp.einsum('hqd,hkd->hqk', q_ref[...], k_ref[...],
                       preferred_element_type=jnp.float32)

        # Causal additive mask generated on the fly from absolute positions (no HBM mask).
        q_pos = qi * t_q + lax.broadcasted_iota(jnp.int32, (t_q, t_kv), 0)
        k_pos = ki * t_kv + lax.broadcasted_iota(jnp.int32, (t_q, t_kv), 1)
        bias = jnp.where(q_pos >= k_pos, 0.0, -1e30).astype(jnp.float32)
        s = s + bias[None, :, :]

        # Online softmax update (f32).
        m_prev = m_scr[...]
        m_new = jnp.maximum(m_prev, jnp.max(s, axis=-1, keepdims=True))
        alpha = jnp.exp(m_prev - m_new)
        p = jnp.exp(s - m_new)
        l_scr[...] = alpha * l_scr[...] + jnp.sum(p, axis=-1, keepdims=True)
        acc_scr[...] = alpha * acc_scr[...] + jnp.einsum(
            'hqk,hkd->hqd', p.astype(v_ref.dtype), v_ref[...],
            preferred_element_type=jnp.float32)
        m_scr[...] = m_new

    @pl.when(ki == n_kv - 1)
    def _finalize():
        # 1/l folded into the small (H, Tq, hs) context; EUP reciprocal.
        ctx = acc_scr[...] * pl.reciprocal(l_scr[...], approx=True)
        ctx = ctx.astype(cat_scr.dtype)
        # Lane-concatenate heads into (Tq, C) so the output projection is ONE full-K matmul.
        for h in range(num_heads):
            cat_scr[:, h * hs:(h + 1) * hs] = ctx[h]
        out = jnp.dot(cat_scr[...], wp_ref[...], preferred_element_type=jnp.float32)
        o_ref[...] = (out + bp_ref[...]).astype(o_ref.dtype)


# --------------------------------------------------------------------------- #
# Wrapper                                                                      #
# --------------------------------------------------------------------------- #
def prepare_mha_params(wq, wk, wv, wp, bp, *, num_heads, head_size,
                       compute_dtype=jnp.bfloat16):
    """One-time weight prep — call at parameter init, NOT per forward."""
    del num_heads  # per-head column layout of wq/wk/wv is preserved as-is
    scale = head_size ** -0.5
    wqkv = jnp.concatenate([wq * scale, wk, wv], axis=1).astype(compute_dtype)  # (C, 3C)
    return dict(wqkv=wqkv,
                wp=wp.astype(compute_dtype),          # (C, C), rows in head-concat order
                bp=bp.astype(jnp.float32))            # (1, C)


def multihead_attention(x, params, *, num_heads, head_size):
    """x: (B, T, C) float32; params from prepare_mha_params. Returns (B, T, C) in x.dtype."""
    B, T, C = x.shape
    H, hs = num_heads, head_size
    N = B * T
    x_bf = x.astype(jnp.bfloat16)

    # ---- Kernel 1: fused full-width QKV projection (bf16 MXU, f32 acc) ----
    tr = _pick_tile(N)
    qkv2 = pl.pallas_call(
        _qkv_proj_kernel,
        out_shape=jax.ShapeDtypeStruct((N, 3 * C), jnp.bfloat16),
        grid_spec=pltpu.PrefetchScalarGridSpec(
            num_scalar_prefetch=0,
            grid=(N // tr,),
            in_specs=[pl.BlockSpec((tr, C), lambda i: (i, 0)),
                      pl.BlockSpec((C, 3 * C), lambda i: (0, 0))],
            out_specs=pl.BlockSpec((tr, 3 * C), lambda i: (i, 0)),
        ),
        compiler_params=pltpu.CompilerParams(
            dimension_semantics=("parallel",),
            vmem_limit_bytes=32 * 1024 * 1024),
    )(x_bf.reshape(N, C), params["wqkv"])

    # Layout plumbing (XLA): head-major (B, H, T, hs) tensors for batched-head attention.
    qkv = jnp.transpose(qkv2.reshape(B, T, 3, H, hs), (2, 0, 3, 1, 4))
    q, k, v = qkv[0], qkv[1], qkv[2]

    # ---- Kernel 2: flash attention + output projection ----
    tq = _pick_tile(T)
    tkv = _pick_tile(T)
    out = pl.pallas_call(
        _flash_mha_kernel,
        out_shape=jax.ShapeDtypeStruct((B, T, C), x.dtype),
        grid_spec=pltpu.PrefetchScalarGridSpec(
            num_scalar_prefetch=0,
            grid=(B, T // tq, T // tkv),
            in_specs=[
                pl.BlockSpec((None, H, tq, hs), lambda b, qi, ki: (b, 0, qi, 0)),   # q
                pl.BlockSpec((None, H, tkv, hs), lambda b, qi, ki: (b, 0, ki, 0)),  # k
                pl.BlockSpec((None, H, tkv, hs), lambda b, qi, ki: (b, 0, ki, 0)),  # v
                pl.BlockSpec((C, C), lambda b, qi, ki: (0, 0)),                     # Wp (resident)
                pl.BlockSpec((1, C), lambda b, qi, ki: (0, 0)),                     # bias (resident)
            ],
            out_specs=pl.BlockSpec((None, tq, C), lambda b, qi, ki: (b, qi, 0)),
            scratch_shapes=[
                pltpu.VMEM((H, tq, 1), jnp.float32),    # m (running max)
                pltpu.VMEM((H, tq, 1), jnp.float32),    # l (running denom)
                pltpu.VMEM((H, tq, hs), jnp.float32),   # acc (unnormalized context)
                pltpu.VMEM((tq, C), jnp.bfloat16),      # lane-concat of head contexts
            ],
        ),
        compiler_params=pltpu.CompilerParams(
            dimension_semantics=("parallel", "parallel", "arbitrary"),
            vmem_limit_bytes=32 * 1024 * 1024),  # re-derive per generation (v7x: 64 MiB phys)
    )(q, k, v, params["wp"], params["bp"])
    return out


# --------------------------------------------------------------------------- #
# Pure-JAX reference mirroring the PyTorch forward                             #
# --------------------------------------------------------------------------- #
def _reference(x, wq, wk, wv, wp, bp, *, num_heads, head_size):
    B, T, C = x.shape
    q = x @ wq
    k = x @ wk
    v = x @ wv
    mask = jnp.tril(jnp.ones((T, T), dtype=bool))
    outs = []
    for h in range(num_heads):
        sl = slice(h * head_size, (h + 1) * head_size)
        wei = (q[..., sl] @ jnp.swapaxes(k[..., sl], -1, -2)) * head_size ** -0.5
        wei = jnp.where(mask, wei, -jnp.inf)
        wei = jax.nn.softmax(wei, axis=-1)
        outs.append(wei @ v[..., sl])
    cat = jnp.concatenate(outs, axis=-1)
    return cat @ wp + bp


if __name__ == "__main__":
    embed_size = 32
    head_size = 8
    num_heads = embed_size // head_size
    B, T, C = 2, 8, embed_size

    key = jax.random.PRNGKey(0)
    kx, kq, kk, kv, kp, kb = jax.random.split(key, 6)

    x = jax.random.normal(kx, (B, T, C), dtype=jnp.float32)
    # Per-head q/k/v weights concatenated along the output dim (each head: C -> hs, no bias).
    wq = jax.random.normal(kq, (C, C), dtype=jnp.float32) * 0.1
    wk = jax.random.normal(kk, (C, C), dtype=jnp.float32) * 0.1
    wv = jax.random.normal(kv, (C, C), dtype=jnp.float32) * 0.1
    # Projection nn.Linear(C, C): stored as W^T so y = x @ wp + bp.
    wp = jax.random.normal(kp, (C, C), dtype=jnp.float32) * 0.1
    bp = jax.random.normal(kb, (1, C), dtype=jnp.float32) * 0.1

    # One-time weight prep (hoisted out of the forward path).
    params = prepare_mha_params(wq, wk, wv, wp, bp,
                                num_heads=num_heads, head_size=head_size)

    out = multihead_attention(x, params, num_heads=num_heads, head_size=head_size)
    out = jax.block_until_ready(out)

    ref = _reference(x, wq, wk, wv, wp, bp, num_heads=num_heads, head_size=head_size)
    assert out.shape == (B, T, C)
    max_err = jnp.max(jnp.abs(out - ref))
    # bf16 MXU operands -> tolerance loosened vs the f32 reference.
    assert jnp.allclose(out, ref, atol=3e-2, rtol=3e-2), \
        f"mismatch vs reference, max abs err {max_err}"

    print("KERNEL_OK")
</pallas_src>

<mosaic_0001>
module attributes {stable_mosaic.version = 11 : i64} {
  func.func @_qkv_proj_kernel(%arg0: i32, %arg1: memref<16x32xbf16, #tpu.memory_space<vmem>>, %arg2: memref<32x96xbf16, #tpu.memory_space<vmem>>, %arg3: memref<16x96xbf16, #tpu.memory_space<vmem>>) attributes {dimension_semantics = [#tpu.dimension_semantics<parallel>], iteration_bounds = array<i64: 1>, scalar_prefetch = 0 : i64, scratch_operands = 0 : i64, tpu.core_type = #tpu.core_type<tc>, window_params = [{transform_indices = @transform_0, window_bounds = array<i64: 16, 32>}, {pipeline_mode = #tpu.pipeline_mode<synchronous>, transform_indices = @transform_1, window_bounds = array<i64: 32, 96>}, {transform_indices = @transform_2, window_bounds = array<i64: 16, 96>}]} {
    %c0 = arith.constant 0 : index
    %c0_0 = arith.constant 0 : index
    %0 = vector.load %arg1[%c0, %c0_0] : memref<16x32xbf16, #tpu.memory_space<vmem>>, vector<16x32xbf16>
    %c0_1 = arith.constant 0 : index
    %c0_2 = arith.constant 0 : index
    %1 = vector.load %arg2[%c0_1, %c0_2] : memref<32x96xbf16, #tpu.memory_space<vmem>>, vector<32x96xbf16>
    %cst = arith.constant dense<0.000000e+00> : vector<16x96xf32>
    %2 = tpu.matmul %0, %1, %cst {dimension_numbers = #tpu.dot_dimension_numbers<[1], [0], [0], [1], [0, 0, 1, 1], [], []>} : vector<16x32xbf16>, vector<32x96xbf16>, vector<16x96xf32> -> vector<16x96xf32>
    %3 = arith.truncf %2 : vector<16x96xf32> to vector<16x96xbf16>
    %c0_3 = arith.constant 0 : index
    %c0_4 = arith.constant 0 : index
    %4 = vector.load %arg3[%c0_3, %c0_4] : memref<16x96xbf16, #tpu.memory_space<vmem>>, vector<16x96xbf16>
    tpu.vector_store %arg3[%c0_3, %c0_4], %3 {strides = array<i32>} : memref<16x96xbf16, #tpu.memory_space<vmem>>, vector<16x96xbf16>,
    return
  }
  func.func @transform_0(%arg0: i32) -> (i32, i32) {
    %c0_i32 = arith.constant 0 : i32
    %c0_i32_0 = arith.constant 0 : i32
    return %arg0, %c0_i32 : i32, i32
  }
  func.func @transform_1(%arg0: i32) -> (i32, i32) {
    %c0_i32 = arith.constant 0 : i32
    %c0_i32_0 = arith.constant 0 : i32
    %c0_i32_1 = arith.constant 0 : i32
    return %c0_i32, %c0_i32_0 : i32, i32
  }
  func.func @transform_2(%arg0: i32) -> (i32, i32) {
    %c0_i32 = arith.constant 0 : i32
    %c0_i32_0 = arith.constant 0 : i32
    return %arg0, %c0_i32 : i32, i32
  }
}

</mosaic_0001>

<llo_original>
// kernel: tpu_custom_call.1
$region0: #{tpu_custom_call.1}
  #allocation0 [shape = 'u32[]', space=smem, size = 0x4, offset = 0x4, fixed_abs, tag = 'smem constant byte address 0x4 - core index']
  #allocation1 [shape = 'u32[144,128]{1,0:T(1,128)}', space=vmem, size = 0x12000, scoped, tag = 'internal scratch']
  %s0 = inlined_call_operand.hbm [shape: bf16[16,32], index: 0, kind: input, shape index: {}]
  %s1 = inlined_call_operand.hbm [shape: bf16[32,96], index: 1, kind: input, shape index: {}]
  %s2 = inlined_call_operand.hbm [shape: bf16[16,96], index: 2, kind: output, shape index: {}]
  %s3 = sld [smem:[#allocation0]]
  $region26: #{tpu_custom_call.1} parent=0
    _
  %s5 = ssub.s32 1, %s3
  %s6 = scalar_select 0, %s5, %s3
  $region1: #{tpu_custom_call.1} parent=0
    #allocation2 [shape = 'u8[4096]{0}', space=vmem, size = 0x1000, scoped, tag = 'input window, operand 0, single buffered']
    #allocation3 [shape = 's32[1]{0}', space=sflag, size = 0x4, scoped, tag = 'scoped memory for tpu_custom_call.1']
    #allocation4 [shape = 's32[1]{0}', space=sflag, size = 0x4, scoped, tag = 'scoped memory for tpu_custom_call.1']
    #allocation5 [shape = 'u8[8192]{0}', space=vmem, size = 0x2000, scoped, tag = 'input window, operand 1, single buffered']
    #allocation6 [shape = 's32[1]{0}', space=sflag, size = 0x4, scoped, tag = 'scoped memory for tpu_custom_call.1']
    #allocation7 [shape = 'u8[4096]{0}', space=vmem, size = 0x1000, scoped, tag = 'output window, operand 0, single buffered']
    %7 = vsyncpa [#allocation3], 0
    %8 = vsyncpa [#allocation6], 0
    %9 = vsyncpa [#allocation4], 0
    // Predicated region
    $region2: #{tpu_custom_call.1} parent=1 // pred_check
      _
    $region3: #{tpu_custom_call.1} parent=1 // pred_check_branch
      %11 = sbr.rel (0) target = $region5
    $region4: #{tpu_custom_call.1} parent=1 // pred_region
      %s13 = ssub.s32 128, 128
      %14 = vsyncadd [#allocation3], %s13
      %s15 = sshll.u32 [#allocation2], 4
      %s16 = int_to_ptr.vmem [resolvable:$true] %s15
      %21 = dma.hbm_to_vmem [thread:$0]  %s0, 128, %s16, [#allocation3], 64, 64, 4
    $region5: #{tpu_custom_call.1} parent=1 // pred_fallthru
      _
    // Predicated region
    $region6: #{tpu_custom_call.1} parent=1 // pred_check
      _
    $region7: #{tpu_custom_call.1} parent=1 // pred_check_branch
      %23 = sbr.rel (0) target = $region9
    $region8: #{tpu_custom_call.1} parent=1 // pred_region
      %s25 = ssub.s32 256, 256
      %26 = vsyncadd [#allocation6], %s25
      %s27 = sshll.u32 [#allocation5], 4
      %s28 = int_to_ptr.vmem [resolvable:$true] %s27
      %33 = dma.hbm_to_vmem [thread:$0]  %s1, 256, %s28, [#allocation6], 64, 64, 4
    $region9: #{tpu_custom_call.1} parent=1 // pred_fallthru
      _
    // Predicated region
    $region10: #{tpu_custom_call.1} parent=1 // pred_check
      _
    $region11: #{tpu_custom_call.1} parent=1 // pred_check_branch
      %35 = sbr.rel (0) target = $region13
    $region12: #{tpu_custom_call.1} parent=1 // pred_region
      %36 = dma.done [#allocation3], 128
    $region13: #{tpu_custom_call.1} parent=1 // pred_fallthru
      _
    // Predicated region
    $region14: #{tpu_custom_call.1} parent=1 // pred_check
      _
    $region15: #{tpu_custom_call.1} parent=1 // pred_check_branch
      %38 = sbr.rel (0) target = $region17
    $region16: #{tpu_custom_call.1} parent=1 // pred_region
      %39 = dma.done [#allocation6], 256
    $region17: #{tpu_custom_call.1} parent=1 // pred_fallthru
      _
    %v41 = vld [vmem:[#allocation2] sm:$0xf]
    %v42 = vld [vmem:[#allocation2 + $0x4] sm:$0xf]
    %v43 = vld [vmem:[#allocation5] sm:$0xf]
    %v44 = vld [vmem:[#allocation5 + $0x4] sm:$0xf]
    %v45 = vld [vmem:[#allocation5 + $0x8] sm:$0xf]
    %v46 = vld [vmem:[#allocation5 + $0xc] sm:$0xf]
    %v49 = vunpack.c.l.b16 %v41
    %v50 = vunpack.c.l.b16 %v42
    %v51 = vpack.c.b16 %v50, %v49
    %v56 = vunpack.c.l.b16 %v43
    %v57 = vunpack.c.l.b16 %v44
    %v58 = vunpack.c.l.b16 %v45
    %v59 = vunpack.c.l.b16 %v46
    %v60 = vpack.c.b16 %v57, %v56
    %v61 = vpack.c.b16 %v59, %v58
    %vm64 = vcmask 261120
    %v66 = vsel %vm64, %v51, 0
    %68 = vmatprep.subr.bf16.mxu0 0
    %69 = vmatpush1.bf16.msra.mxu0 %v60
    %70 = vmatprep.subr.bf16.mxu0 0
    %71 = vmatpush1.bf16.msra.mxu0 %v61
    %72 = vmatprep.subr.bf16.mxu0 0
    %73 = vmatpush1.bf16.msra.mxu0 0
    %74 = vmatprep.subr.bf16.mxu0 0
    %75 = vmatpush1.bf16.msra.mxu0 0
    %76 = vmatprep.subr.bf16.mxu0 0
    %77 = vmatpush1.bf16.msra.mxu0 0
    %78 = vmatprep.subr.bf16.mxu0 0
    %79 = vmatpush1.bf16.msra.mxu0 0
    %80 = vmatprep.subr.bf16.mxu0 0
    %81 = vmatpush1.bf16.msra.mxu0 0
    %82 = vmatprep.subr.bf16.mxu0 0
    %83 = vmatpush1.bf16.msra.mxu0 0
    %84 = vmatprep.subr.bf16.mxu0 0
    %85 = vmatpush1.bf16.msra.mxu0 0
    %86 = vmatprep.subr.bf16.mxu0 0
    %87 = vmatpush1.bf16.msra.mxu0 0
    %88 = vmatprep.subr.bf16.mxu0 0
    %89 = vmatpush1.bf16.msra.mxu0 0
    %90 = vmatprep.subr.bf16.mxu0 0
    %91 = vmatpush1.bf16.msra.mxu0 0
    %92 = vmatprep.subr.bf16.mxu0 0
    %93 = vmatpush1.bf16.msra.mxu0 0
    %94 = vmatprep.subr.bf16.mxu0 0
    %95 = vmatpush1.bf16.msra.mxu0 0
    %96 = vmatprep.subr.bf16.mxu0 0
    %97 = vmatpush1.bf16.msra.mxu0 0
    %98 = vmatprep.subr.bf16.mxu0 0
    %99 = vmatpush1.bf16.msra.mxu0 0
    %100 = vmatprep.mubr.bf16.mxu0 0
    %101 = vmatmul.mubr.bf16.gmra.mrb[0].mxu0 %v66
    %v102 = vpop.f32.mrb[0].mxu0
    %v103 = vadd.f32 0.0, %v102
    %v104 = vpop.f32.mrb[0].mxu0
    %v105 = vpop.f32.mrb[0].mxu0
    %v106 = vadd.f32 0.0, %v105
    %v107 = vpop.f32.mrb[0].mxu0
    %108 = vdwg.mxu0
    %v109 = vpack.c.bf16 %v106, %v103
    %v111 = vunpack.c.l.b16 %v109
    %v112 = vunpack.c.h.b16 %v109
    %v113 = vpack.c.b16 %v111, %v111
    %v114 = vpack.c.b16 %v112, %v112
    %vm117 = vcmask 781312
    %118 = vst.msk [vmem:[#allocation7] sm:$0xf] %vm117, %v113
    %119 = vst.msk [vmem:[#allocation7 + $0x4] sm:$0xf] %vm117, %v114
    // Predicated region
    $region18: #{tpu_custom_call.1} parent=1 // pred_check
      _
    $region19: #{tpu_custom_call.1} parent=1 // pred_check_branch
      %121 = sbr.rel (0) target = $region21
    $region20: #{tpu_custom_call.1} parent=1 // pred_region
      %s123 = ssub.s32 128, 128
      %124 = vsyncadd [#allocation4], %s123
      %s125 = sshll.u32 [#allocation7], 4
      %s126 = int_to_ptr.vmem [resolvable:$true] %s125
      %131 = dma.vmem_to_hbm [thread:$0]  %s126, 128, %s2, [#allocation4], 64, 64, 4
    $region21: #{tpu_custom_call.1} parent=1 // pred_fallthru
      _
    // Predicated region
    $region22: #{tpu_custom_call.1} parent=1 // pred_check
      _
    $region23: #{tpu_custom_call.1} parent=1 // pred_check_branch
      %133 = sbr.rel (0) target = $region25
    $region24: #{tpu_custom_call.1} parent=1 // pred_region
      %134 = dma.done [#allocation4], 128
    $region25: #{tpu_custom_call.1} parent=1 // pred_fallthru
      _
    %135 = vsyncpa [#allocation3], 1
    %136 = vsyncpa [#allocation6], 1
    %137 = vsyncpa [#allocation4], 1

</llo_original>
